<compile_context>
chip_gen: v5e
topology: v5e:2x2
jax: 0.10.0
libtpu: 0.0.40
codegen_flags: <defaults>
</compile_context>

<pallas_src>
import functools

import jax
import jax.numpy as jnp
from jax.experimental import pallas as pl
from jax.experimental.pallas import tpu as pltpu


def _pos_loss_kernel(*refs, n_outputs, use_weight):
    """refs = (pred_0 .. pred_{n-1}, gt, [w], out, acc).

    pred_i, gt : [tN, tHW] VMEM tiles in native dtype (N = B*K rows, HW lanes)
    w          : [tN, 1]   per-(batch, joint) weight
    out        : [tN, 1]   f32 per-row weighted sum of squared diffs
    acc        : [tN, 1]   f32 VMEM accumulator, persistent across the HW axis
    """
    pred_refs = refs[:n_outputs]
    gt_ref = refs[n_outputs]
    idx = n_outputs + 1
    w_ref = None
    if use_weight:
        w_ref = refs[idx]
        idx += 1
    out_ref = refs[idx]
    acc_ref = refs[idx + 1]

    h = pl.program_id(1)

    @pl.when(h == 0)
    def _():
        acc_ref[...] = jnp.zeros_like(acc_ref)

    gt = gt_ref[...].astype(jnp.float32)
    rowsum = jnp.zeros((gt.shape[0], 1), jnp.float32)
    for p_ref in pred_refs:                       # unrolled: main + aux outputs
        d = p_ref[...].astype(jnp.float32) - gt
        rowsum = rowsum + jnp.sum(d * d, axis=-1, keepdims=True)
    acc_ref[...] += rowsum

    @pl.when(h == pl.num_programs(1) - 1)
    def _():
        if use_weight:
            w = w_ref[...].astype(jnp.float32)
            out_ref[...] = acc_ref[...] * (w * w)   # (w*diff)^2 == w^2 * diff^2
        else:
            out_ref[...] = acc_ref[...]


def _pick_tile(dim, align, target):
    """Largest multiple of `align` that divides `dim` and is <= target, else full dim."""
    if dim <= target or dim % align != 0:
        return dim
    for mult in range(target // align, 0, -1):
        t = mult * align
        if dim % t == 0:
            return t
    return dim


def _fused_row_sums(preds, gt, weight):
    """preds: list of (N, HW); gt: (N, HW); weight: (N, 1) or None. Returns (N,1) f32."""
    N, HW = gt.shape
    n_outputs = len(preds)
    use_weight = weight is not None

    # Row (sublane) tile over B*K; lane tile over HW. Keep the double-buffered
    # VMEM footprint of all streamed inputs modest so it also fits v7x
    # (64 MiB physical / 32 MiB default-scoped VMEM).
    tN = _pick_tile(N, 8, 256)
    budget = 24 * 1024 * 1024
    n_streams = n_outputs + 1                     # all preds + gt
    max_thw = max(128, budget // (2 * n_streams * tN * 4))
    tHW = _pick_tile(HW, 128, min(2048, max_thw))

    grid = (N // tN, HW // tHW)

    tile_spec = pl.BlockSpec((tN, tHW), lambda r, h: (r, h))
    in_specs = [tile_spec] * (n_outputs + 1)      # preds share gt's block indices
    args = list(preds) + [gt]
    if use_weight:
        in_specs.append(pl.BlockSpec((tN, 1), lambda r, h: (r, 0)))
        args.append(weight)

    kernel = functools.partial(_pos_loss_kernel,
                               n_outputs=n_outputs, use_weight=use_weight)
    return pl.pallas_call(
        kernel,
        out_shape=jax.ShapeDtypeStruct((N, 1), jnp.float32),
        grid_spec=pltpu.PrefetchScalarGridSpec(
            num_scalar_prefetch=0,
            grid=grid,
            in_specs=in_specs,
            out_specs=pl.BlockSpec((tN, 1), lambda r, h: (r, 0)),
            scratch_shapes=[pltpu.VMEM((tN, 1), jnp.float32)],
        ),
        compiler_params=pltpu.CompilerParams(
            dimension_semantics=("parallel", "arbitrary")),
    )(*args)


def base_pos_loss(outputs, target, target_weight, *,
                  use_target_weight=True, aux_loss=True):
    """JAX/Pallas equivalent of BasePosLoss.forward.

    outputs: dict with 'pred_masks' (B, K, H, W) and optional 'aux_outputs'
             (list of dicts with 'pred_masks').
    target: (B, K, H, W); target_weight: (B, K, 1).
    """
    preds = [outputs['pred_masks']]
    if 'aux_outputs' in outputs and aux_loss:
        preds += [aux['pred_masks'] for aux in outputs['aux_outputs']]

    B, K = target.shape[0], target.shape[1]
    N = B * K
    gt2 = target.reshape(N, -1)                   # metadata-only reshapes, no copy
    HW = gt2.shape[1]
    preds2 = [p.reshape(N, HW) for p in preds]
    w2 = target_weight.reshape(N, 1) if use_target_weight else None

    partials = _fused_row_sums(preds2, gt2, w2)   # (N, 1) f32 per-row sums
    return jnp.sum(partials) * (1.0 / float(B * HW * K))


def _reference_loss(outputs, target, target_weight, use_target_weight=True,
                    aux_loss=True):
    """Pure-JAX reference mirroring the PyTorch loop for validation."""
    def one(pred):
        B, K = pred.shape[0], pred.shape[1]
        p = pred.reshape(B, K, -1).astype(jnp.float32)
        g = target.reshape(B, K, -1).astype(jnp.float32)
        w = target_weight.reshape(B, K, 1).astype(jnp.float32)
        total = 0.0
        for k in range(K):
            if use_target_weight:
                total = total + jnp.mean(((p[:, k] - g[:, k]) * w[:, k]) ** 2)
            else:
                total = total + jnp.mean((p[:, k] - g[:, k]) ** 2)
        return total

    K = outputs['pred_masks'].shape[1]
    loss = one(outputs['pred_masks'])
    if 'aux_outputs' in outputs and aux_loss:
        for aux in outputs['aux_outputs']:
            loss = loss + one(aux['pred_masks'])
    return loss / K


if __name__ == "__main__":
    key = jax.random.PRNGKey(0)
    B, K, H, W = 2, 4, 16, 16  # batch, num_joints, heatmap spatial

    k1, k2, k3, k4, k5 = jax.random.split(key, 5)
    pred_masks = jax.random.normal(k1, (B, K, H, W), dtype=jnp.float32)
    target = jax.random.normal(k2, (B, K, H, W), dtype=jnp.float32)
    target_weight = jax.random.uniform(k3, (B, K, 1), dtype=jnp.float32)
    aux0 = jax.random.normal(k4, (B, K, H, W), dtype=jnp.float32)
    aux1 = jax.random.normal(k5, (B, K, H, W), dtype=jnp.float32)

    outputs = {
        'pred_masks': pred_masks,
        'aux_outputs': [{'pred_masks': aux0}, {'pred_masks': aux1}],
    }

    # main path: target-weighted, main + 2 aux outputs fused in one kernel
    loss = jax.block_until_ready(
        base_pos_loss(outputs, target, target_weight,
                      use_target_weight=True, aux_loss=True))
    ref = _reference_loss(outputs, target, target_weight)
    assert jnp.allclose(loss, ref, rtol=1e-5, atol=1e-6), (loss, ref)

    # specialized path: no target weight (weight operand dropped from the kernel)
    loss_nw = jax.block_until_ready(
        base_pos_loss(outputs, target, target_weight,
                      use_target_weight=False, aux_loss=True))
    ref_nw = _reference_loss(outputs, target, target_weight,
                             use_target_weight=False)
    assert jnp.allclose(loss_nw, ref_nw, rtol=1e-5, atol=1e-6), (loss_nw, ref_nw)

    # native-dtype streaming: bf16 inputs, f32 math in-kernel
    outputs_bf = {
        'pred_masks': pred_masks.astype(jnp.bfloat16),
        'aux_outputs': [{'pred_masks': aux0.astype(jnp.bfloat16)},
                        {'pred_masks': aux1.astype(jnp.bfloat16)}],
    }
    target_bf = target.astype(jnp.bfloat16)
    loss_bf = jax.block_until_ready(
        base_pos_loss(outputs_bf, target_bf, target_weight))
    ref_bf = _reference_loss(outputs_bf, target_bf, target_weight)
    assert jnp.allclose(loss_bf, ref_bf, rtol=1e-3, atol=1e-4), (loss_bf, ref_bf)

    print("KERNEL_OK")
</pallas_src>

<mosaic_0001>
module attributes {stable_mosaic.version = 11 : i64} {
  func.func @_pos_loss_kernel(%arg0: i32, %arg1: i32, %arg2: memref<8x256xf32, #tpu.memory_space<vmem>>, %arg3: memref<8x256xf32, #tpu.memory_space<vmem>>, %arg4: memref<8x256xf32, #tpu.memory_space<vmem>>, %arg5: memref<8x256xf32, #tpu.memory_space<vmem>>, %arg6: memref<8x1xf32, #tpu.memory_space<vmem>>, %arg7: memref<8x1xf32, #tpu.memory_space<vmem>>, %arg8: memref<8x1xf32, #tpu.memory_space<vmem>>) attributes {dimension_semantics = [#tpu.dimension_semantics<parallel>, #tpu.dimension_semantics<arbitrary>], iteration_bounds = array<i64: 1, 1>, scalar_prefetch = 0 : i64, scratch_operands = 1 : i64, tpu.core_type = #tpu.core_type<tc>, window_params = [{transform_indices = @transform_0, window_bounds = array<i64: 8, 256>}, {transform_indices = @transform_1, window_bounds = array<i64: 8, 256>}, {transform_indices = @transform_2, window_bounds = array<i64: 8, 256>}, {transform_indices = @transform_3, window_bounds = array<i64: 8, 256>}, {transform_indices = @transform_4, window_bounds = array<i64: 8, 1>}, {transform_indices = @transform_5, window_bounds = array<i64: 8, 1>}]} {
    %c0_i32 = arith.constant 0 : i32
    %0 = arith.cmpi eq, %arg1, %c0_i32 : i32
    %1 = arith.extui %0 : i1 to i32
    %c0_i32_0 = arith.constant 0 : i32
    %2 = arith.cmpi ne, %1, %c0_i32_0 : i32
    scf.if %2 {
      %cst_17 = arith.constant 0.000000e+00 : f32
      %29 = vector.broadcast %cst_17 : f32 to vector<8x1xf32>
      %c0_18 = arith.constant 0 : index
      %c0_19 = arith.constant 0 : index
      %30 = vector.load %arg8[%c0_18, %c0_19] : memref<8x1xf32, #tpu.memory_space<vmem>>, vector<8x1xf32>
      tpu.vector_store %arg8[%c0_18, %c0_19], %29 {strides = array<i32>} : memref<8x1xf32, #tpu.memory_space<vmem>>, vector<8x1xf32>,
    } else {
    }
    %c0 = arith.constant 0 : index
    %c0_1 = arith.constant 0 : index
    %3 = vector.load %arg5[%c0, %c0_1] : memref<8x256xf32, #tpu.memory_space<vmem>>, vector<8x256xf32>
    %cst = arith.constant 0.000000e+00 : f32
    %4 = vector.broadcast %cst : f32 to vector<8x1xf32>
    %c0_2 = arith.constant 0 : index
    %c0_3 = arith.constant 0 : index
    %5 = vector.load %arg2[%c0_2, %c0_3] : memref<8x256xf32, #tpu.memory_space<vmem>>, vector<8x256xf32>
    %6 = arith.subf %5, %3 : vector<8x256xf32>
    %7 = arith.mulf %6, %6 : vector<8x256xf32>
    %cst_4 = arith.constant dense<0.000000e+00> : vector<8xf32>
    %8 = vector.multi_reduction <add>, %7, %cst_4 [1] : vector<8x256xf32> to vector<8xf32>
    %9 = vector.shape_cast %8 : vector<8xf32> to vector<8x1xf32>
    %10 = arith.addf %4, %9 : vector<8x1xf32>
    %c0_5 = arith.constant 0 : index
    %c0_6 = arith.constant 0 : index
    %11 = vector.load %arg3[%c0_5, %c0_6] : memref<8x256xf32, #tpu.memory_space<vmem>>, vector<8x256xf32>
    %12 = arith.subf %11, %3 : vector<8x256xf32>
    %13 = arith.mulf %12, %12 : vector<8x256xf32>
    %cst_7 = arith.constant dense<0.000000e+00> : vector<8xf32>
    %14 = vector.multi_reduction <add>, %13, %cst_7 [1] : vector<8x256xf32> to vector<8xf32>
    %15 = vector.shape_cast %14 : vector<8xf32> to vector<8x1xf32>
    %16 = arith.addf %10, %15 : vector<8x1xf32>
    %c0_8 = arith.constant 0 : index
    %c0_9 = arith.constant 0 : index
    %17 = vector.load %arg4[%c0_8, %c0_9] : memref<8x256xf32, #tpu.memory_space<vmem>>, vector<8x256xf32>
    %18 = arith.subf %17, %3 : vector<8x256xf32>
    %19 = arith.mulf %18, %18 : vector<8x256xf32>
    %cst_10 = arith.constant dense<0.000000e+00> : vector<8xf32>
    %20 = vector.multi_reduction <add>, %19, %cst_10 [1] : vector<8x256xf32> to vector<8xf32>
    %21 = vector.shape_cast %20 : vector<8xf32> to vector<8x1xf32>
    %22 = arith.addf %16, %21 : vector<8x1xf32>
    %c0_11 = arith.constant 0 : index
    %c0_12 = arith.constant 0 : index
    %23 = vector.load %arg8[%c0_11, %c0_12] : memref<8x1xf32, #tpu.memory_space<vmem>>, vector<8x1xf32>
    %24 = arith.addf %23, %22 : vector<8x1xf32>
    %c0_13 = arith.constant 0 : index
    %c0_14 = arith.constant 0 : index
    %25 = vector.load %arg8[%c0_13, %c0_14] : memref<8x1xf32, #tpu.memory_space<vmem>>, vector<8x1xf32>
    tpu.vector_store %arg8[%c0_13, %c0_14], %24 {strides = array<i32>} : memref<8x1xf32, #tpu.memory_space<vmem>>, vector<8x1xf32>,
    %c0_i32_15 = arith.constant 0 : i32
    %26 = arith.cmpi eq, %arg1, %c0_i32_15 : i32
    %27 = arith.extui %26 : i1 to i32
    %c0_i32_16 = arith.constant 0 : i32
    %28 = arith.cmpi ne, %27, %c0_i32_16 : i32
    scf.if %28 {
      %c0_17 = arith.constant 0 : index
      %c0_18 = arith.constant 0 : index
      %29 = vector.load %arg6[%c0_17, %c0_18] : memref<8x1xf32, #tpu.memory_space<vmem>>, vector<8x1xf32>
      %c0_19 = arith.constant 0 : index
      %c0_20 = arith.constant 0 : index
      %30 = vector.load %arg8[%c0_19, %c0_20] : memref<8x1xf32, #tpu.memory_space<vmem>>, vector<8x1xf32>
      %31 = arith.mulf %29, %29 : vector<8x1xf32>
      %32 = arith.mulf %30, %31 : vector<8x1xf32>
      %c0_21 = arith.constant 0 : index
      %c0_22 = arith.constant 0 : index
      %33 = vector.load %arg7[%c0_21, %c0_22] : memref<8x1xf32, #tpu.memory_space<vmem>>, vector<8x1xf32>
      tpu.vector_store %arg7[%c0_21, %c0_22], %32 {strides = array<i32>} : memref<8x1xf32, #tpu.memory_space<vmem>>, vector<8x1xf32>,
    } else {
    }
    return
  }
  func.func @transform_0(%arg0: i32, %arg1: i32) -> (i32, i32) {
    %c0_i32 = arith.constant 0 : i32
    return %arg0, %arg1 : i32, i32
  }
  func.func @transform_1(%arg0: i32, %arg1: i32) -> (i32, i32) {
    %c0_i32 = arith.constant 0 : i32
    return %arg0, %arg1 : i32, i32
  }
  func.func @transform_2(%arg0: i32, %arg1: i32) -> (i32, i32) {
    %c0_i32 = arith.constant 0 : i32
    return %arg0, %arg1 : i32, i32
  }
  func.func @transform_3(%arg0: i32, %arg1: i32) -> (i32, i32) {
    %c0_i32 = arith.constant 0 : i32
    return %arg0, %arg1 : i32, i32
  }
  func.func @transform_4(%arg0: i32, %arg1: i32) -> (i32, i32) {
    %c0_i32 = arith.constant 0 : i32
    %c0_i32_0 = arith.constant 0 : i32
    return %arg0, %c0_i32 : i32, i32
  }
  func.func @transform_5(%arg0: i32, %arg1: i32) -> (i32, i32) {
    %c0_i32 = arith.constant 0 : i32
    %c0_i32_0 = arith.constant 0 : i32
    return %arg0, %c0_i32 : i32, i32
  }
}

</mosaic_0001>

<llo_original>
// kernel: tpu_custom_call.1
$region0: #{tpu_custom_call.1}
  #allocation0 [shape = 'u32[]', space=smem, size = 0x4, offset = 0x4, fixed_abs, tag = 'smem constant byte address 0x4 - core index']
  #allocation1 [shape = 'u32[72,128]{1,0:T(1,128)}', space=vmem, size = 0x9000, scoped, tag = 'internal scratch']
  #allocation2 [shape = 'f32[8,1]{1,0:T(8,128)}', space=vmem, size = 0x1000, scoped, tag = 'scratch operand']
  %s0 = inlined_call_operand.hbm [shape: f32[8,256], index: 0, kind: input, shape index: {}]
  %s1 = inlined_call_operand.hbm [shape: f32[8,256], index: 1, kind: input, shape index: {}]
  %s2 = inlined_call_operand.hbm [shape: f32[8,256], index: 2, kind: input, shape index: {}]
  %s3 = inlined_call_operand.hbm [shape: f32[8,256], index: 3, kind: input, shape index: {}]
  %s4 = inlined_call_operand.vmem [shape: f32[8,1], index: 4, kind: input, shape index: {}]
  %s5 = inlined_call_operand.vmem [shape: f32[8,1], index: 5, kind: output, shape index: {}]
  %s6 = sld [smem:[#allocation0]]
  $region54: #{tpu_custom_call.1} parent=0
    _
  %s8 = ssub.s32 1, %s6
  %s9 = scalar_select 0, %s8, %s6
  $region1: #{tpu_custom_call.1} parent=0
    #allocation3 [shape = 'u8[8192]{0}', space=vmem, size = 0x2000, scoped, tag = 'input window, operand 0, single buffered']
    #allocation4 [shape = 's32[1]{0}', space=sflag, size = 0x4, scoped, tag = 'scoped memory for tpu_custom_call.1']
    #allocation5 [shape = 'u8[8192]{0}', space=vmem, size = 0x2000, scoped, tag = 'input window, operand 1, single buffered']
    #allocation6 [shape = 's32[1]{0}', space=sflag, size = 0x4, scoped, tag = 'scoped memory for tpu_custom_call.1']
    #allocation7 [shape = 'u8[8192]{0}', space=vmem, size = 0x2000, scoped, tag = 'input window, operand 2, single buffered']
    #allocation8 [shape = 'u8[8192]{0}', space=vmem, size = 0x2000, scoped, tag = 'input window, operand 3, single buffered']
    #allocation9 [shape = 's32[1]{0}', space=sflag, size = 0x4, scoped, tag = 'scoped memory for tpu_custom_call.1']
    %10 = vsyncpa [#allocation4], 0
    %11 = vsyncpa [#allocation6], 0
    %12 = vsyncpa [#allocation9], 0
    // Predicated region
    $region2: #{tpu_custom_call.1} parent=1 // pred_check
      _
    $region3: #{tpu_custom_call.1} parent=1 // pred_check_branch
      %14 = sbr.rel (0) target = $region5
    $region4: #{tpu_custom_call.1} parent=1 // pred_region
      %16 = vsyncadd [#allocation4], 0
      %s18 = sshll.u32 %s0, 4
      %s19 = int_to_ptr.hbm [resolvable:$true] %s18
      %s20 = sshll.u32 [#allocation3], 4
      %s21 = int_to_ptr.vmem [resolvable:$true] %s20
      %23 = dma.hbm_to_vmem [thread:$0]  %s19, 256, %s21, [#allocation4]
    $region5: #{tpu_custom_call.1} parent=1 // pred_fallthru
      _
    // Predicated region
    $region6: #{tpu_custom_call.1} parent=1 // pred_check
      _
    $region7: #{tpu_custom_call.1} parent=1 // pred_check_branch
      %25 = sbr.rel (0) target = $region9
    $region8: #{tpu_custom_call.1} parent=1 // pred_region
      %27 = vsyncadd [#allocation6], 0
      %s29 = sshll.u32 %s1, 4
      %s30 = int_to_ptr.hbm [resolvable:$true] %s29
      %s31 = sshll.u32 [#allocation5], 4
      %s32 = int_to_ptr.vmem [resolvable:$true] %s31
      %34 = dma.hbm_to_vmem [thread:$0]  %s30, 256, %s32, [#allocation6]
    $region9: #{tpu_custom_call.1} parent=1 // pred_fallthru
      _
    // Predicated region
    $region10: #{tpu_custom_call.1} parent=1 // pred_check
      _
    $region11: #{tpu_custom_call.1} parent=1 // pred_check_branch
      %36 = sbr.rel (0) target = $region13
    $region12: #{tpu_custom_call.1} parent=1 // pred_region
      %38 = vsyncadd [#allocation6], 0
      %s40 = sshll.u32 %s2, 4
      %s41 = int_to_ptr.hbm [resolvable:$true] %s40
      %s42 = sshll.u32 [#allocation7], 4
      %s43 = int_to_ptr.vmem [resolvable:$true] %s42
      %45 = dma.hbm_to_vmem [thread:$0]  %s41, 256, %s43, [#allocation6]
    $region13: #{tpu_custom_call.1} parent=1 // pred_fallthru
      _
    // Predicated region
    $region14: #{tpu_custom_call.1} parent=1 // pred_check
      _
    $region15: #{tpu_custom_call.1} parent=1 // pred_check_branch
      %47 = sbr.rel (0) target = $region17
    $region16: #{tpu_custom_call.1} parent=1 // pred_region
      %49 = vsyncadd [#allocation9], 0
      %s51 = sshll.u32 %s3, 4
      %s52 = int_to_ptr.hbm [resolvable:$true] %s51
      %s53 = sshll.u32 [#allocation8], 4
      %s54 = int_to_ptr.vmem [resolvable:$true] %s53
      %56 = dma.hbm_to_vmem [thread:$0]  %s52, 256, %s54, [#allocation9]
    $region17: #{tpu_custom_call.1} parent=1 // pred_fallthru
      _
    // Predicated region
    $region18: #{tpu_custom_call.1} parent=1 // pred_check
      _
    $region19: #{tpu_custom_call.1} parent=1 // pred_check_branch
      %58 = sbr.rel (0) target = $region21
    $region20: #{tpu_custom_call.1} parent=1 // pred_region
      _
    $region21: #{tpu_custom_call.1} parent=1 // pred_fallthru
      _
    // Predicated region
    $region22: #{tpu_custom_call.1} parent=1 // pred_check
      _
    $region23: #{tpu_custom_call.1} parent=1 // pred_check_branch
      %60 = sbr.rel (0) target = $region25
    $region24: #{tpu_custom_call.1} parent=1 // pred_region
      %62 = dma.done [#allocation4], 256
    $region25: #{tpu_custom_call.1} parent=1 // pred_fallthru
      _
    // Predicated region
    $region26: #{tpu_custom_call.1} parent=1 // pred_check
      _
    $region27: #{tpu_custom_call.1} parent=1 // pred_check_branch
      %64 = sbr.rel (0) target = $region29
    $region28: #{tpu_custom_call.1} parent=1 // pred_region
      %66 = dma.done [#allocation6], 256
    $region29: #{tpu_custom_call.1} parent=1 // pred_fallthru
      _
    // Predicated region
    $region30: #{tpu_custom_call.1} parent=1 // pred_check
      _
    $region31: #{tpu_custom_call.1} parent=1 // pred_check_branch
      %68 = sbr.rel (0) target = $region33
    $region32: #{tpu_custom_call.1} parent=1 // pred_region
      %70 = dma.done [#allocation6], 256
    $region33: #{tpu_custom_call.1} parent=1 // pred_fallthru
      _
    // Predicated region
    $region34: #{tpu_custom_call.1} parent=1 // pred_check
      _
    $region35: #{tpu_custom_call.1} parent=1 // pred_check_branch
      %72 = sbr.rel (0) target = $region37
    $region36: #{tpu_custom_call.1} parent=1 // pred_region
      %74 = dma.done [#allocation9], 256
    $region37: #{tpu_custom_call.1} parent=1 // pred_fallthru
      _
    %p75 = scmp.eq.s32.totalorder 0, 0
    // Predicated region
    $region38: #{tpu_custom_call.1} parent=1 // pred_check
      %p76 = pneg %p75
    $region39: #{tpu_custom_call.1} parent=1 // pred_check_branch
      %78 = sbr.rel (%p76) target = $region41
    $region40: #{tpu_custom_call.1} parent=1 // pred_region
      %vm79 = vcmask 7168
      %80 = vst.msk [vmem:[#allocation2] sm:$0xff] %vm79, 0.0
    $region41: #{tpu_custom_call.1} parent=1 // pred_fallthru
      _
    %v81 = vld [vmem:[#allocation8] sm:$0xff]
    %v82 = vld [vmem:[#allocation8 + $0x8] sm:$0xff]
    %v83 = vld [vmem:[#allocation3] sm:$0xff]
    %v84 = vld [vmem:[#allocation3 + $0x8] sm:$0xff]
    %v85 = vsub.f32 %v83, %v81
    %v86 = vsub.f32 %v84, %v82
    %v87 = vmul.f32 %v85, %v85
    %v88 = vmul.f32 %v86, %v86
    %v89 = vadd.f32 %v87, %v88
    %90 = vadd.xlane.f32.xlu0 %v89
    %v91 = vpop.xlane.xlu0 %90
    %v92 = vadd.f32 %v91, 0.0
    %v93 = vld [vmem:[#allocation5] sm:$0xff]
    %v94 = vld [vmem:[#allocation5 + $0x8] sm:$0xff]
    %v95 = vsub.f32 %v93, %v81
    %v96 = vsub.f32 %v94, %v82
    %v97 = vmul.f32 %v95, %v95
    %v98 = vmul.f32 %v96, %v96
    %v99 = vadd.f32 %v97, %v98
    %100 = vadd.xlane.f32.xlu0 %v99
    %v101 = vpop.xlane.xlu0 %100
    %v102 = vadd.f32 %v92, %v101
    %v103 = vld [vmem:[#allocation7] sm:$0xff]
    %v104 = vld [vmem:[#allocation7 + $0x8] sm:$0xff]
    %v105 = vsub.f32 %v103, %v81
    %v106 = vsub.f32 %v104, %v82
    %v107 = vmul.f32 %v105, %v105
    %v108 = vmul.f32 %v106, %v106
    %v109 = vadd.f32 %v107, %v108
    %110 = vadd.xlane.f32.xlu0 %v109
    %v111 = vpop.xlane.xlu0 %110
    %v112 = vadd.f32 %v102, %v111
    %v113 = vld [vmem:[#allocation2] sm:$0xff]
    %v114 = vadd.f32 %v113, %v112
    %vm115 = vcmask 7168
    %116 = vst.msk [vmem:[#allocation2] sm:$0xff] %vm115, %v114
    // Predicated region
    $region42: #{tpu_custom_call.1} parent=1 // pred_check
      %p117 = pneg %p75
    $region43: #{tpu_custom_call.1} parent=1 // pred_check_branch
      %119 = sbr.rel (%p117) target = $region45
    $region44: #{tpu_custom_call.1} parent=1 // pred_region
      %v120 = vld [vmem:[%s4] sm:$0xff]
      %v121 = vld [vmem:[#allocation2] sm:$0xff]
      %v122 = vmul.f32 %v120, %v120
      %v123 = vmul.f32 %v121, %v122
      %124 = vst.msk [vmem:[%s5] sm:$0xff] %vm115, %v123
    $region45: #{tpu_custom_call.1} parent=1 // pred_fallthru
      _
    // Predicated region
    $region46: #{tpu_custom_call.1} parent=1 // pred_check
      _
    $region47: #{tpu_custom_call.1} parent=1 // pred_check_branch
      %126 = sbr.rel (0) target = $region49
    $region48: #{tpu_custom_call.1} parent=1 // pred_region
      _
    $region49: #{tpu_custom_call.1} parent=1 // pred_fallthru
      _
    // Predicated region
    $region50: #{tpu_custom_call.1} parent=1 // pred_check
      _
    $region51: #{tpu_custom_call.1} parent=1 // pred_check_branch
      %128 = sbr.rel (0) target = $region53
    $region52: #{tpu_custom_call.1} parent=1 // pred_region
      _
    $region53: #{tpu_custom_call.1} parent=1 // pred_fallthru
      _
    %129 = vsyncpa [#allocation4], 1
    %130 = vsyncpa [#allocation6], 1
    %131 = vsyncpa [#allocation9], 1

</llo_original>
